<compile_context>
chip_gen: v5e
topology: v5e:2x2
jax: 0.10.0
libtpu: 0.0.40
codegen_flags: <defaults>
</compile_context>

<pallas_src>
import functools

import jax
import jax.numpy as jnp
from jax.experimental import pallas as pl
from jax.experimental.pallas import tpu as pltpu


def _rmsnorm_kernel(x_ref, w_ref, o_ref, *, eps, inv_hidden):
    # x_ref: (row_tile, hidden) VMEM tile; w_ref: (1, hidden), VMEM-resident
    # across all grid steps (constant index_map).
    xf = x_ref[...].astype(jnp.float32)
    # Sum of squares over the hidden (lane) axis, scaled by the compile-time
    # constant 1/hidden; single cross-lane reduce (XLU) + rsqrt (EUP).
    ss = jnp.sum(xf * xf, axis=-1, keepdims=True)
    inv = jax.lax.rsqrt(ss * inv_hidden + eps)
    w = w_ref[...].astype(jnp.float32)
    # Re-read x_ref for the scale step so a full f32 copy of the tile is not
    # kept live across the reduction (matters for bf16/int8 tiles).
    o_ref[...] = (x_ref[...].astype(jnp.float32) * (inv * w)).astype(o_ref.dtype)


def _round_down(v, m):
    return (v // m) * m


def _round_up(v, m):
    return -(-v // m) * m


def _tpu_vmem_capacity_bytes():
    try:
        return int(pltpu.get_tpu_info().vmem_capacity_bytes)
    except Exception:
        # Conservative default (v5e/v6e class).
        return 128 * 1024 * 1024


def _choose_row_tile(rows, hidden, dtype, vmem_budget_bytes):
    """Pick the largest row tile that fits the VMEM budget."""
    itemsize = jnp.dtype(dtype).itemsize
    # Sub-32-bit dtypes pack rows along sublanes: bf16 -> 16, int8/fp8 -> 32.
    pack = max(8, 32 // itemsize)
    # Per-row VMEM: double-buffered in + out (4 * itemsize) + ~1 f32 temp.
    per_row_bytes = hidden * (4 * itemsize + 4)
    tile = vmem_budget_bytes // max(per_row_bytes, 1)
    tile = min(tile, 2048)
    if rows >= 4 * pack:
        # Keep >= 4 grid steps so the pipeline reaches steady state and both
        # v7x TensorCores get >= 2 blocks each under CORE_PARALLEL.
        tile = min(tile, _round_up(rows, 4) // 4)
    else:
        tile = min(tile, _round_up(rows, pack))
    tile = max(pack, _round_down(tile, pack))
    return tile


def rmsnorm(x, weight, eps=1e-6, row_tile=None):
    """RMSNorm over the last axis of x, scaled by `weight` (shape (hidden,))."""
    orig_shape = x.shape
    hidden = orig_shape[-1]
    x2d = x.reshape(-1, hidden)
    rows = x2d.shape[0]
    w2d = weight.reshape(1, hidden)

    vmem_cap = _tpu_vmem_capacity_bytes()
    small_vmem = vmem_cap <= (80 << 20)  # v7x-class: 64 MiB per TensorCore

    if row_tile is None:
        budget = (24 << 20) if small_vmem else (48 << 20)
        row_tile = _choose_row_tile(rows, hidden, x.dtype, budget)

    # Ragged last block instead of padding: rows are independent, so the
    # out-of-bounds tail never contaminates valid output rows.
    grid = (rows + row_tile - 1) // row_tile

    itemsize = jnp.dtype(x.dtype).itemsize
    tile_bytes = row_tile * hidden * itemsize

    # Optional deeper input pipelining for tiny blocks (covers DMA latency).
    use_buf3 = (hidden <= 2048) and (tile_bytes <= (512 << 10)) and (grid >= 8)
    if use_buf3:
        x_spec = pl.BlockSpec((row_tile, hidden), lambda i: (i, 0),
                              pipeline_mode=pl.Buffered(3))
        n_in_bufs = 3
    else:
        x_spec = pl.BlockSpec((row_tile, hidden), lambda i: (i, 0))
        n_in_bufs = 2

    f32_tmp = row_tile * hidden * 4
    weight_bytes = 2 * hidden * jnp.dtype(weight.dtype).itemsize
    # Pipelined input + double-buffered output, f32 temps, weight, headroom.
    vmem_limit = (n_in_bufs + 2) * tile_bytes + 2 * f32_tmp + weight_bytes + (8 << 20)
    cap = (44 << 20) if small_vmem else (100 << 20)
    vmem_limit = int(min(max(vmem_limit, 16 << 20), cap))

    # Explicit 2-TensorCore split on v7x; plain parallel elsewhere (v5e/v6e
    # have a single TC, where the choice has no measured effect).
    if small_vmem and grid >= 2:
        dim_sem = (pltpu.CORE_PARALLEL,)
    else:
        dim_sem = ("parallel",)

    out = pl.pallas_call(
        functools.partial(_rmsnorm_kernel, eps=eps, inv_hidden=1.0 / hidden),
        out_shape=jax.ShapeDtypeStruct((rows, hidden), x.dtype),
        grid_spec=pltpu.PrefetchScalarGridSpec(
            num_scalar_prefetch=0,
            grid=(grid,),
            in_specs=[
                x_spec,
                # Constant index_map: weight stays resident in VMEM, no re-DMA.
                pl.BlockSpec((1, hidden), lambda i: (0, 0)),
            ],
            out_specs=pl.BlockSpec((row_tile, hidden), lambda i: (i, 0)),
        ),
        compiler_params=pltpu.CompilerParams(
            dimension_semantics=dim_sem,
            vmem_limit_bytes=vmem_limit,
        ),
    )(x2d, w2d)

    return out.reshape(orig_shape)


def rmsnorm_ref(x, weight, eps=1e-6):
    xf = x.astype(jnp.float32)
    ms = jnp.mean(xf * xf, axis=-1, keepdims=True)
    return (weight * (xf * jax.lax.rsqrt(ms + eps))).astype(x.dtype)


if __name__ == "__main__":
    key = jax.random.PRNGKey(0)

    # Main smoke test: batch=2, seq=8, hidden=32 (as implied by the module).
    batch, seq, hidden = 2, 8, 32
    x = jax.random.normal(key, (batch, seq, hidden), dtype=jnp.float32)
    # nn.Parameter(torch.ones(dim)) — deterministic init, all ones
    weight = jnp.ones((hidden,), dtype=jnp.float32)

    out = rmsnorm(x, weight, eps=1e-6)
    jax.block_until_ready(out)
    ref = rmsnorm_ref(x, weight, eps=1e-6)
    assert out.shape == x.shape
    assert jnp.allclose(out, ref, atol=1e-5, rtol=1e-5), "mismatch vs reference"

    # Ragged-grid check: rows (3*8=24) not divisible by row_tile (16), so the
    # last block runs out-of-bounds and its masked writes must not corrupt
    # valid rows.
    x2 = jax.random.normal(jax.random.PRNGKey(1), (3, 8, hidden),
                           dtype=jnp.float32)
    out2 = rmsnorm(x2, weight, eps=1e-6, row_tile=16)
    jax.block_until_ready(out2)
    ref2 = rmsnorm_ref(x2, weight, eps=1e-6)
    assert jnp.allclose(out2, ref2, atol=1e-5, rtol=1e-5), "ragged-grid mismatch"

    print("KERNEL_OK")
</pallas_src>

<mosaic_0001>
module attributes {stable_mosaic.version = 11 : i64} {
  func.func @_rmsnorm_kernel(%arg0: i32, %arg1: memref<16x32xf32, #tpu.memory_space<vmem>>, %arg2: memref<1x32xf32, #tpu.memory_space<vmem>>, %arg3: memref<16x32xf32, #tpu.memory_space<vmem>>) attributes {dimension_semantics = [#tpu.dimension_semantics<parallel>], iteration_bounds = array<i64: 1>, scalar_prefetch = 0 : i64, scratch_operands = 0 : i64, tpu.core_type = #tpu.core_type<tc>, window_params = [{transform_indices = @transform_0, window_bounds = array<i64: 16, 32>}, {pipeline_mode = #tpu.pipeline_mode<synchronous>, transform_indices = @transform_1, window_bounds = array<i64: 1, 32>}, {transform_indices = @transform_2, window_bounds = array<i64: 16, 32>}]} {
    %c0 = arith.constant 0 : index
    %c0_0 = arith.constant 0 : index
    %0 = vector.load %arg1[%c0, %c0_0] : memref<16x32xf32, #tpu.memory_space<vmem>>, vector<16x32xf32>
    %1 = arith.mulf %0, %0 : vector<16x32xf32>
    %cst = arith.constant dense<0.000000e+00> : vector<16xf32>
    %2 = vector.multi_reduction <add>, %1, %cst [1] : vector<16x32xf32> to vector<16xf32>
    %3 = vector.shape_cast %2 : vector<16xf32> to vector<16x1xf32>
    %cst_1 = arith.constant 3.125000e-02 : f32
    %4 = vector.broadcast %cst_1 : f32 to vector<16x1xf32>
    %5 = arith.mulf %3, %4 : vector<16x1xf32>
    %cst_2 = arith.constant 9.99999997E-7 : f32
    %6 = vector.broadcast %cst_2 : f32 to vector<16x1xf32>
    %7 = arith.addf %5, %6 : vector<16x1xf32>
    %8 = math.rsqrt %7 : vector<16x1xf32>
    %c0_3 = arith.constant 0 : index
    %c0_4 = arith.constant 0 : index
    %9 = vector.load %arg2[%c0_3, %c0_4] : memref<1x32xf32, #tpu.memory_space<vmem>>, vector<1x32xf32>
    %c0_5 = arith.constant 0 : index
    %c0_6 = arith.constant 0 : index
    %10 = vector.load %arg1[%c0_5, %c0_6] : memref<16x32xf32, #tpu.memory_space<vmem>>, vector<16x32xf32>
    %11 = vector.broadcast %8 : vector<16x1xf32> to vector<16x32xf32>
    %12 = vector.broadcast %9 : vector<1x32xf32> to vector<16x32xf32>
    %13 = arith.mulf %11, %12 : vector<16x32xf32>
    %14 = arith.mulf %10, %13 : vector<16x32xf32>
    %c0_7 = arith.constant 0 : index
    %c0_8 = arith.constant 0 : index
    %15 = vector.load %arg3[%c0_7, %c0_8] : memref<16x32xf32, #tpu.memory_space<vmem>>, vector<16x32xf32>
    tpu.vector_store %arg3[%c0_7, %c0_8], %14 {strides = array<i32>} : memref<16x32xf32, #tpu.memory_space<vmem>>, vector<16x32xf32>,
    return
  }
  func.func @transform_0(%arg0: i32) -> (i32, i32) {
    %c0_i32 = arith.constant 0 : i32
    %c0_i32_0 = arith.constant 0 : i32
    return %arg0, %c0_i32 : i32, i32
  }
  func.func @transform_1(%arg0: i32) -> (i32, i32) {
    %c0_i32 = arith.constant 0 : i32
    %c0_i32_0 = arith.constant 0 : i32
    %c0_i32_1 = arith.constant 0 : i32
    return %c0_i32, %c0_i32_0 : i32, i32
  }
  func.func @transform_2(%arg0: i32) -> (i32, i32) {
    %c0_i32 = arith.constant 0 : i32
    %c0_i32_0 = arith.constant 0 : i32
    return %arg0, %c0_i32 : i32, i32
  }
}

</mosaic_0001>

<llo_original>
// kernel: tpu_custom_call.1
$region0: #{tpu_custom_call.1}
  #allocation0 [shape = 'u32[]', space=smem, size = 0x4, offset = 0x4, fixed_abs, tag = 'smem constant byte address 0x4 - core index']
  #allocation1 [shape = 'u32[72,128]{1,0:T(1,128)}', space=vmem, size = 0x9000, scoped, tag = 'internal scratch']
  %s0 = inlined_call_operand.hbm [shape: f32[16,32], index: 0, kind: input, shape index: {}]
  %s1 = inlined_call_operand.hbm [shape: f32[1,32], index: 1, kind: input, shape index: {}]
  %s2 = inlined_call_operand.hbm [shape: f32[16,32], index: 2, kind: output, shape index: {}]
  %s3 = sld [smem:[#allocation0]]
  $region26: #{tpu_custom_call.1} parent=0
    _
  %s5 = ssub.s32 1, %s3
  %s6 = scalar_select 0, %s5, %s3
  $region1: #{tpu_custom_call.1} parent=0
    #allocation2 [shape = 'u8[8192]{0}', space=vmem, size = 0x2000, scoped, tag = 'input window, operand 0, single buffered']
    #allocation3 [shape = 's32[1]{0}', space=sflag, size = 0x4, scoped, tag = 'scoped memory for tpu_custom_call.1']
    #allocation4 [shape = 's32[1]{0}', space=sflag, size = 0x4, scoped, tag = 'scoped memory for tpu_custom_call.1']
    #allocation5 [shape = 'u8[512]{0}', space=vmem, size = 0x400, scoped, tag = 'input window, operand 1, single buffered']
    #allocation6 [shape = 's32[1]{0}', space=sflag, size = 0x4, scoped, tag = 'scoped memory for tpu_custom_call.1']
    #allocation7 [shape = 'u8[8192]{0}', space=vmem, size = 0x2000, scoped, tag = 'output window, operand 0, single buffered']
    %7 = vsyncpa [#allocation3], 0
    %8 = vsyncpa [#allocation6], 0
    %9 = vsyncpa [#allocation4], 0
    // Predicated region
    $region2: #{tpu_custom_call.1} parent=1 // pred_check
      _
    $region3: #{tpu_custom_call.1} parent=1 // pred_check_branch
      %11 = sbr.rel (0) target = $region5
    $region4: #{tpu_custom_call.1} parent=1 // pred_region
      %13 = vsyncadd [#allocation3], 0
      %s14 = sshll.u32 %s0, 4
      %s15 = int_to_ptr.hbm [resolvable:$true] %s14
      %s16 = sshll.u32 [#allocation2], 4
      %s17 = int_to_ptr.vmem [resolvable:$true] %s16
      %22 = dma.hbm_to_vmem [thread:$0]  %s15, 256, %s17, [#allocation3], 128, 128, 8
    $region5: #{tpu_custom_call.1} parent=1 // pred_fallthru
      _
    // Predicated region
    $region6: #{tpu_custom_call.1} parent=1 // pred_check
      _
    $region7: #{tpu_custom_call.1} parent=1 // pred_check_branch
      %24 = sbr.rel (0) target = $region9
    $region8: #{tpu_custom_call.1} parent=1 // pred_region
      %26 = vsyncadd [#allocation6], 0
      %s28 = sshll.u32 %s1, 4
      %s29 = int_to_ptr.hbm [resolvable:$true] %s28
      %s30 = sshll.u32 [#allocation5], 4
      %s31 = int_to_ptr.vmem [resolvable:$true] %s30
      %33 = dma.hbm_to_vmem [thread:$0]  %s29, 16, %s31, [#allocation6]
    $region9: #{tpu_custom_call.1} parent=1 // pred_fallthru
      _
    // Predicated region
    $region10: #{tpu_custom_call.1} parent=1 // pred_check
      _
    $region11: #{tpu_custom_call.1} parent=1 // pred_check_branch
      %35 = sbr.rel (0) target = $region13
    $region12: #{tpu_custom_call.1} parent=1 // pred_region
      %37 = dma.done [#allocation3], 256
    $region13: #{tpu_custom_call.1} parent=1 // pred_fallthru
      _
    // Predicated region
    $region14: #{tpu_custom_call.1} parent=1 // pred_check
      _
    $region15: #{tpu_custom_call.1} parent=1 // pred_check_branch
      %39 = sbr.rel (0) target = $region17
    $region16: #{tpu_custom_call.1} parent=1 // pred_region
      %41 = dma.done [#allocation6], 16
    $region17: #{tpu_custom_call.1} parent=1 // pred_fallthru
      _
    %v42 = vld [vmem:[#allocation2] sm:$0xff]
    %v43 = vld [vmem:[#allocation2 + $0x8] sm:$0xff]
    %v44 = vmul.f32 %v42, %v42
    %v45 = vmul.f32 %v43, %v43
    %vm46 = vcmask 261120
    %v47 = vsel %vm46, %v44, 0.0
    %48 = vadd.xlane.f32.xlu0 %v47
    %v49 = vpop.xlane.xlu0 %48
    %v50 = vsel %vm46, %v45, 0.0
    %51 = vadd.xlane.f32.xlu0 %v50
    %v52 = vpop.xlane.xlu0 %51
    %v53 = vmul.f32 %v49, 0.03125
    %v54 = vmul.f32 %v52, 0.03125
    %v55 = vadd.f32 %v53, 1e-06
    %v56 = vadd.f32 %v54, 1e-06
    %v57 = vrsqrt.pop %v55
    %v58 = vmul.f32 %v57, %v55
    %v59 = vmul.f32 %v58, %v57
    %v60 = vmul.f32 0.5, %v59
    %v61 = vsub.f32 1.5, %v60
    %v62 = vmul.f32 %v57, %v61
    %vm63 = vweird.f32 %v55
    %vm64 = vweird.f32 %v57
    %vm65 = vmor %vm63, %vm64
    %v66 = vsel %vm65, %v57, %v62
    %v67 = vrsqrt.pop %v56
    %v68 = vmul.f32 %v67, %v56
    %v69 = vmul.f32 %v68, %v67
    %v70 = vmul.f32 0.5, %v69
    %v71 = vsub.f32 1.5, %v70
    %v72 = vmul.f32 %v67, %v71
    %vm73 = vweird.f32 %v56
    %vm74 = vweird.f32 %v67
    %vm75 = vmor %vm73, %vm74
    %v76 = vsel %vm75, %v67, %v72
    %v77 = vld [vmem:[#allocation5] sm:$0x1]
    %v79 = vperm.slane %v77, 0
    %v81 = vmul.f32 %v66, %v79
    %v82 = vmul.f32 %v76, %v79
    %v83 = vmul.f32 %v42, %v81
    %v84 = vmul.f32 %v43, %v82
    %85 = vst.msk [vmem:[#allocation7] sm:$0xff] %vm46, %v83
    %86 = vst.msk [vmem:[#allocation7 + $0x8] sm:$0xff] %vm46, %v84
    // Predicated region
    $region18: #{tpu_custom_call.1} parent=1 // pred_check
      _
    $region19: #{tpu_custom_call.1} parent=1 // pred_check_branch
      %88 = sbr.rel (0) target = $region21
    $region20: #{tpu_custom_call.1} parent=1 // pred_region
      %90 = vsyncadd [#allocation4], 0
      %s91 = sshll.u32 [#allocation7], 4
      %s92 = int_to_ptr.vmem [resolvable:$true] %s91
      %s93 = sshll.u32 %s2, 4
      %s94 = int_to_ptr.hbm [resolvable:$true] %s93
      %99 = dma.vmem_to_hbm [thread:$0]  %s92, 256, %s94, [#allocation4], 128, 128, 8
    $region21: #{tpu_custom_call.1} parent=1 // pred_fallthru
      _
    // Predicated region
    $region22: #{tpu_custom_call.1} parent=1 // pred_check
      _
    $region23: #{tpu_custom_call.1} parent=1 // pred_check_branch
      %101 = sbr.rel (0) target = $region25
    $region24: #{tpu_custom_call.1} parent=1 // pred_region
      %103 = dma.done [#allocation4], 256
    $region25: #{tpu_custom_call.1} parent=1 // pred_fallthru
      _
    %104 = vsyncpa [#allocation3], 1
    %105 = vsyncpa [#allocation6], 1
    %106 = vsyncpa [#allocation4], 1

</llo_original>
